<compile_context>
chip_gen: v7x
topology: tpu7x:2x2x1
jax: 0.10.0
libtpu: 0.0.40
codegen_flags: <defaults>
</compile_context>

<pallas_src>
import math

import jax
import jax.numpy as jnp
from jax.experimental import pallas as pl
from jax.experimental.pallas import tpu as pltpu


# ----------------------------------------------------------------------------
# Packed-Ensembles channel bookkeeping (mirrors PackedConv1d.__init__ math)
# ----------------------------------------------------------------------------
def packed_conv1d_config(
    in_channels: int,
    out_channels: int,
    kernel_size: int,
    alpha: int,
    num_estimators: int,
    gamma: int = 1,
    groups: int = 1,
    minimum_channels_per_group: int = 64,
    first: bool = False,
    last: bool = False,
):
    assert alpha is not None and alpha > 0
    assert isinstance(gamma, int) and gamma > 0
    assert isinstance(num_estimators, int) and num_estimators > 0

    extended_in_channels = int(in_channels * (1 if first else alpha))
    extended_out_channels = int(out_channels * (num_estimators if last else alpha))
    actual_groups = 1 if first else gamma * groups * num_estimators

    while (
        extended_in_channels % actual_groups != 0
        or extended_in_channels // actual_groups < minimum_channels_per_group
    ) and actual_groups // (groups * num_estimators) > 1:
        gamma -= 1
        actual_groups = gamma * groups * num_estimators

    if extended_in_channels % actual_groups:
        extended_in_channels += num_estimators - extended_in_channels % actual_groups
    if extended_out_channels % actual_groups:
        extended_out_channels += num_estimators - extended_out_channels % actual_groups

    return extended_in_channels, extended_out_channels, actual_groups, kernel_size


# ----------------------------------------------------------------------------
# Pallas kernel: one (group, batch, L-tile) block of the grouped conv1d
# ----------------------------------------------------------------------------
def _packed_conv1d_kernel(x_ref, w_ref, b_ref, o_ref):
    # x_ref: (1, 1, K*Cin_g, L_tile)  im2col slab for this (n, g, lt)
    # w_ref: (1, Cout_g, K*Cin_g)     group weights (constant across n, lt)
    # b_ref: (1, Cout_g, 1)           group bias (f32)
    # o_ref: (1, 1, Cout_g, L_tile)
    acc = jnp.dot(w_ref[0], x_ref[0, 0], preferred_element_type=jnp.float32)
    acc = acc + b_ref[0]  # (Cout_g, 1) broadcasts over the lane (L) dim
    o_ref[0, 0] = acc.astype(o_ref.dtype)


def _pick_l_tile(l_out: int, cout_g: int, kc: int, itemsize: int) -> int:
    """Choose the output-length tile (lane dim of the output block)."""
    if l_out <= 128:
        return l_out  # tiny problem: single full-extent tile
    # multiple of 128; cap so the f32 acc stays <= ~128 KiB and the x block a
    # few MiB (keeps vregs unspilled and fits v7x's smaller VMEM).
    cap_acc = max(128, (128 * 1024) // (max(cout_g, 1) * 4))
    cap_x = max(128, (4 * 1024 * 1024) // max(kc * itemsize, 1))
    cap = min(512, cap_acc, cap_x)
    cap = max(128, (cap // 128) * 128)
    l_round = -(-l_out // 128) * 128
    return int(min(cap, l_round))


def packed_conv1d_forward(
    x,
    weight,
    bias=None,
    *,
    groups: int,
    stride: int = 1,
    padding: int = 0,
    dilation: int = 1,
    compute_dtype=None,
):
    """Grouped conv1d with PyTorch F.conv1d semantics (zeros padding).

    x:      (N, Cin, L)
    weight: (Cout, Cin // groups, K)
    bias:   (Cout,) or None
    returns (N, Cout, L_out)
    """
    N, Cin, L = x.shape
    Cout, Cin_g, K = weight.shape
    G = int(groups)
    if not isinstance(padding, int):
        # TODO(synk): string padding ('same'/'valid') not implemented; ints only.
        raise NotImplementedError("only integer padding is supported")
    assert Cin == Cin_g * G, "in_channels must equal groups * (Cin // groups)"
    assert Cout % G == 0, "out_channels must be divisible by groups"
    assert stride >= 1 and dilation >= 1 and padding >= 0
    Cout_g = Cout // G

    L_pad = L + 2 * padding
    L_out = (L_pad - dilation * (K - 1) - 1) // stride + 1
    if L_out <= 0:
        raise ValueError(
            f"non-positive output length ({L_out}) for L={L}, padding={padding}, "
            f"dilation={dilation}, kernel_size={K}, stride={stride}"
        )

    out_dtype = x.dtype
    cdt = jnp.dtype(compute_dtype) if compute_dtype is not None else jnp.dtype(x.dtype)

    # --- glue: zero-pad + im2col (folds K, stride, dilation into contraction) ---
    # TODO(synk): for very long sequences, the padded + im2col copies cost extra
    # HBM traffic; an in-kernel halo load (pl.ANY + manual DMA) would avoid it.
    x_pad = jnp.pad(x, ((0, 0), (0, 0), (padding, padding))) if padding else x
    x_g = x_pad.reshape(N, G, Cin_g, L_pad)
    span = (L_out - 1) * stride + 1
    taps = [
        x_g[:, :, :, k * dilation : k * dilation + span : stride] for k in range(K)
    ]
    x_col = jnp.concatenate(taps, axis=2).astype(cdt)  # (N, G, K*Cin_g, L_out)
    KC = K * Cin_g

    # weights reordered so contraction index = k*Cin_g + ci, matching x_col rows
    w_col = (
        weight.reshape(G, Cout_g, Cin_g, K)
        .transpose(0, 1, 3, 2)
        .reshape(G, Cout_g, KC)
        .astype(cdt)
    )
    if bias is None:
        bias = jnp.zeros((Cout,), jnp.float32)
    b_col = bias.reshape(G, Cout_g, 1).astype(jnp.float32)

    # --- lane tiling of the output length (lane-dense stores) ---
    L_tile = _pick_l_tile(L_out, Cout_g, KC, cdt.itemsize)
    n_lt = -(-L_out // L_tile)
    L_out_pad = n_lt * L_tile
    if L_out_pad != L_out:
        # zero columns just produce bias in the output; sliced off below
        x_col = jnp.pad(x_col, ((0, 0), (0, 0), (0, 0), (0, L_out_pad - L_out)))

    # --- explicit VMEM budget (v5e scoped default is only 16 MiB) ---
    isz = cdt.itemsize
    osz = jnp.dtype(out_dtype).itemsize
    est = (
        2 * (KC * L_tile * isz + Cout_g * L_tile * osz)  # double-buffered x / out
        + 2 * Cout_g * KC * isz
        + 2 * Cout_g * 4
    )
    vmem_limit = int(min(max(32 * 1024 * 1024, 2 * est), 64 * 1024 * 1024))

    out = pl.pallas_call(
        _packed_conv1d_kernel,
        out_shape=jax.ShapeDtypeStruct((N, G, Cout_g, L_out_pad), out_dtype),
        grid=(G, N, n_lt),  # group outermost -> weight block DMA'd once per group
        in_specs=[
            pl.BlockSpec((1, 1, KC, L_tile), lambda g, n, lt: (n, g, 0, lt)),
            pl.BlockSpec((1, Cout_g, KC), lambda g, n, lt: (g, 0, 0)),
            pl.BlockSpec((1, Cout_g, 1), lambda g, n, lt: (g, 0, 0)),
        ],
        out_specs=pl.BlockSpec((1, 1, Cout_g, L_tile), lambda g, n, lt: (n, g, 0, lt)),
        compiler_params=pltpu.CompilerParams(
            dimension_semantics=("parallel", "parallel", "parallel"),
            vmem_limit_bytes=vmem_limit,
        ),
    )(x_col, w_col, b_col)

    return out[..., :L_out].reshape(N, Cout, L_out)


# ----------------------------------------------------------------------------
# Demo / self-check (small shapes, deterministic)
# ----------------------------------------------------------------------------
if __name__ == "__main__":
    # Module hyperparameters (small, consistent with PackedConv1d).
    in_channels, out_channels = 8, 8
    kernel_size = 3
    alpha, num_estimators, gamma, groups = 2, 2, 1, 1

    ext_in, ext_out, actual_groups, K = packed_conv1d_config(
        in_channels, out_channels, kernel_size, alpha, num_estimators, gamma, groups
    )
    # -> ext_in=16, ext_out=16, actual_groups=2

    key = jax.random.PRNGKey(0)
    kx, kw, kb = jax.random.split(key, 3)

    # Deterministic parameter init (kaiming-uniform-style bounds, like nn.Conv1d).
    fan_in = (ext_in // actual_groups) * K
    w_bound = 1.0 / math.sqrt(fan_in)
    weight = jax.random.uniform(
        kw, (ext_out, ext_in // actual_groups, K), jnp.float32, -w_bound, w_bound
    )
    bias = jax.random.uniform(kb, (ext_out,), jnp.float32, -w_bound, w_bound)

    cases = [
        dict(N=2, L=16, stride=1, padding=1, dilation=1),
        dict(N=2, L=17, stride=2, padding=2, dilation=2),  # stride/dilation now supported
    ]
    for i, c in enumerate(cases):
        kcase = jax.random.fold_in(kx, i)
        # forward() receives the already alpha-extended channel count.
        x = jax.random.normal(kcase, (c["N"], ext_in, c["L"]), jnp.float32)

        out = packed_conv1d_forward(
            x,
            weight,
            bias,
            groups=actual_groups,
            stride=c["stride"],
            padding=c["padding"],
            dilation=c["dilation"],
        )
        out = jax.block_until_ready(out)

        # Reference: XLA grouped conv (same semantics as F.conv1d).
        ref = jax.lax.conv_general_dilated(
            x,
            weight,
            window_strides=(c["stride"],),
            padding=[(c["padding"], c["padding"])],
            rhs_dilation=(c["dilation"],),
            dimension_numbers=("NCH", "OIH", "NCH"),
            feature_group_count=actual_groups,
        ) + bias[None, :, None]

        assert out.shape == ref.shape, f"shape mismatch in case {i}: {out.shape} vs {ref.shape}"
        assert jnp.allclose(out, ref, atol=1e-4, rtol=1e-4), f"mismatch vs reference conv (case {i})"

    print("KERNEL_OK")
</pallas_src>

<mosaic_0001>
module attributes {stable_mosaic.version = 11 : i64} {
  func.func @_packed_conv1d_kernel(%arg0: i32, %arg1: i32, %arg2: i32, %arg3: memref<1x1x24x16xf32, #tpu.memory_space<vmem>>, %arg4: memref<1x8x24xf32, #tpu.memory_space<vmem>>, %arg5: memref<1x8x1xf32, #tpu.memory_space<vmem>>, %arg6: memref<1x1x8x16xf32, #tpu.memory_space<vmem>>) attributes {dimension_semantics = [#tpu.dimension_semantics<parallel>, #tpu.dimension_semantics<parallel>, #tpu.dimension_semantics<parallel>], iteration_bounds = array<i64: 2, 2, 1>, scalar_prefetch = 0 : i64, scratch_operands = 0 : i64, tpu.core_type = #tpu.core_type<tc>, window_params = [{transform_indices = @transform_0, window_bounds = array<i64: 1, 1, 24, 16>}, {transform_indices = @transform_1, window_bounds = array<i64: 1, 8, 24>}, {transform_indices = @transform_2, window_bounds = array<i64: 1, 8, 1>}, {transform_indices = @transform_3, window_bounds = array<i64: 1, 1, 8, 16>}]} {
    %c0 = arith.constant 0 : index
    %c0_0 = arith.constant 0 : index
    %c0_1 = arith.constant 0 : index
    %0 = vector.load %arg4[%c0, %c0_0, %c0_1] : memref<1x8x24xf32, #tpu.memory_space<vmem>>, vector<1x8x24xf32>
    %1 = vector.shape_cast %0 : vector<1x8x24xf32> to vector<8x24xf32>
    %c0_2 = arith.constant 0 : index
    %c0_3 = arith.constant 0 : index
    %c0_4 = arith.constant 0 : index
    %c0_5 = arith.constant 0 : index
    %2 = vector.load %arg3[%c0_2, %c0_3, %c0_4, %c0_5] : memref<1x1x24x16xf32, #tpu.memory_space<vmem>>, vector<1x1x24x16xf32>
    %3 = vector.shape_cast %2 : vector<1x1x24x16xf32> to vector<24x16xf32>
    %cst = arith.constant dense<0.000000e+00> : vector<8x16xf32>
    %4 = tpu.matmul %1, %3, %cst {dimension_numbers = #tpu.dot_dimension_numbers<[1], [0], [0], [1], [0, 0, 1, 1], [], []>} : vector<8x24xf32>, vector<24x16xf32>, vector<8x16xf32> -> vector<8x16xf32>
    %c0_6 = arith.constant 0 : index
    %c0_7 = arith.constant 0 : index
    %c0_8 = arith.constant 0 : index
    %5 = vector.load %arg5[%c0_6, %c0_7, %c0_8] : memref<1x8x1xf32, #tpu.memory_space<vmem>>, vector<1x8x1xf32>
    %6 = vector.shape_cast %5 : vector<1x8x1xf32> to vector<8x1xf32>
    %7 = vector.broadcast %6 : vector<8x1xf32> to vector<8x16xf32>
    %8 = arith.addf %4, %7 : vector<8x16xf32>
    %c0_9 = arith.constant 0 : index
    %c0_10 = arith.constant 0 : index
    %c0_11 = arith.constant 0 : index
    %c0_12 = arith.constant 0 : index
    %9 = vector.load %arg6[%c0_9, %c0_10, %c0_11, %c0_12] : memref<1x1x8x16xf32, #tpu.memory_space<vmem>>, vector<1x1x8x16xf32>
    %10 = vector.shape_cast %9 : vector<1x1x8x16xf32> to vector<8x16xf32>
    %11 = vector.shape_cast %8 : vector<8x16xf32> to vector<1x1x8x16xf32>
    tpu.vector_store %arg6[%c0_9, %c0_10, %c0_11, %c0_12], %11 {strides = array<i32>} : memref<1x1x8x16xf32, #tpu.memory_space<vmem>>, vector<1x1x8x16xf32>,
    return
  }
  func.func @transform_0(%arg0: i32, %arg1: i32, %arg2: i32) -> (i32, i32, i32, i32) {
    %c0_i32 = arith.constant 0 : i32
    %c0_i32_0 = arith.constant 0 : i32
    return %arg1, %arg0, %c0_i32, %arg2 : i32, i32, i32, i32
  }
  func.func @transform_1(%arg0: i32, %arg1: i32, %arg2: i32) -> (i32, i32, i32) {
    %c0_i32 = arith.constant 0 : i32
    %c0_i32_0 = arith.constant 0 : i32
    %c0_i32_1 = arith.constant 0 : i32
    return %arg0, %c0_i32, %c0_i32_0 : i32, i32, i32
  }
  func.func @transform_2(%arg0: i32, %arg1: i32, %arg2: i32) -> (i32, i32, i32) {
    %c0_i32 = arith.constant 0 : i32
    %c0_i32_0 = arith.constant 0 : i32
    %c0_i32_1 = arith.constant 0 : i32
    return %arg0, %c0_i32, %c0_i32_0 : i32, i32, i32
  }
  func.func @transform_3(%arg0: i32, %arg1: i32, %arg2: i32) -> (i32, i32, i32, i32) {
    %c0_i32 = arith.constant 0 : i32
    %c0_i32_0 = arith.constant 0 : i32
    return %arg1, %arg0, %c0_i32, %arg2 : i32, i32, i32, i32
  }
}

</mosaic_0001>

<llo_original>
// kernel: tpu_custom_call.1
$region0: #{tpu_custom_call.1}
  #allocation0 [shape = 'u32[]', space=smem, size = 0x4, offset = 0x4, fixed_abs, tag = 'smem constant byte address 0x4 - core index']
  #allocation1 [shape = 'u32[144,128]{1,0:T(1,128)}', space=vmem, size = 0x12000, scoped, tag = 'internal scratch']
  %s0 = inlined_call_operand.vmem [shape: f32[2,2,24,16], index: 0, kind: input, shape index: {}]
  %s1 = inlined_call_operand.vmem [shape: f32[2,8,24], index: 1, kind: input, shape index: {}]
  %s2 = inlined_call_operand.vmem [shape: f32[2,8,1], index: 2, kind: input, shape index: {}]
  %s3 = inlined_call_operand.hbm [shape: f32[2,2,8,16], index: 3, kind: output, shape index: {}]
  %s4 = sld [smem:[#allocation0]]
  $region45: #{tpu_custom_call.1} parent=0
    _
  %s6 = ssub.s32 1, %s4
  %s7 = scalar_select 0, %s6, %s4
  $region1: #{tpu_custom_call.1} parent=0
    #allocation2 [shape = 'u8[8192]{0}', space=vmem, size = 0x2000, scoped, tag = 'output window, operand 0']
    #allocation3 [shape = 's32[2]{0}', space=sflag, size = 0x8, scoped, tag = 'scoped memory for tpu_custom_call.1']
    %8 = vsyncpa [#allocation3], 0
    %s9 = scalar_lea.sflag [#allocation3], 1
    %10 = vsyncpa %s9, 0
    loop: start=0, step=1, limit=6
    $region2: #{tpu_custom_call.1} parent=1 // loop_pre_header
      _
    $region3: #{tpu_custom_call.1} parent=1 // loop_header
      %s12 = sphi 0, %s16
      %p13 = scmp.ge.s32.totalorder %s12, 6
      %s19 = sphi 0, %s38
      %s20 = sphi 0, %s34
      %s21 = sphi 0, %s30
      %s22 = sphi 0, %s19
      %s23 = sphi 0, %s20
      %s24 = sphi 0, %s21
      %s25 = sphi 0, %s22
      %s26 = sphi 0, %s23
      %s27 = sphi 0, %s24
      %s45 = sphi 0, %s47
      %s48 = sphi 0, %s45
      %s49 = sphi 0, %s48
      %s65 = sphi 0, %s49
      %s71 = sphi 0, %s73
      %s74 = sphi 0, %s71
      %s75 = sphi 0, %s74
      %s91 = sphi 0, %s75
      %s97 = sphi 0, %s99
      %s100 = sphi 0, %s97
      %s101 = sphi 0, %s100
      %s117 = sphi 0, %s101
      %s127 = sphi 0, %s129
      %s130 = sphi 0, %s127
      %s131 = sphi 0, %s130
      %s147 = sphi 0, %s131
    $region4: #{tpu_custom_call.1} parent=1 // loop_header_branch
      %15 = sbr.rel (%p13) target = $region8
    $region5: #{tpu_custom_call.1} parent=1 // loop_body
      %s17 = ssub.s32 %s12, 1
      %s18 = ssub.s32 %s12, 2
      %s28 = sadd.s32 1, %s21
      %p29 = scmp.ge.s32.totalorder %s28, 1
      %s30 = scalar_select %p29, 0, %s28
      %s31 = sadd.s32 1, %s20
      %s32 = scalar_select %p29, %s31, %s20
      %p33 = scmp.ge.s32.totalorder %s32, 2
      %s34 = scalar_select %p33, 0, %s32
      %s35 = sadd.s32 1, %s19
      %s36 = scalar_select %p33, %s35, %s19
      %p37 = scmp.ge.s32.totalorder %s36, 2
      %s38 = scalar_select %p37, 0, %s36
      %s39 = ssub.s32 %s20, %s34
      %s40 = ssub.s32 %s19, %s38
      %s41 = sor.u32 %s39, %s40
      %s42 = ssub.s32 %s21, %s30
      %s43 = sor.u32 %s41, %s42
      %p44 = scmp.eq.s32.totalorder %s43, 0
      %s46 = sadd.s32 %s45, 1
      %s47 = scalar_select %p44, %s45, %s46
      %p50 = pneg %p44
      %p51 = scmp.eq.s32.totalorder %s12, 3
      %p52 = por %p50, %p51
      %p53 = scmp.ne.s32.totalorder %s45, %s48
      %p54 = scmp.eq.s32.totalorder %s12, 0
      %p55 = por %p53, %p54
      %p56 = scmp.ne.s32.totalorder %s45, %s48
      %p57 = scmp.eq.s32.totalorder %s17, 3
      %p58 = por %p56, %p57
      %p59 = scmp.ne.s32.totalorder %s48, %s49
      %p60 = scmp.eq.s32.totalorder %s17, 0
      %p61 = por %p59, %p60
      %p62 = scmp.ne.s32.totalorder %s48, %s49
      %p63 = scmp.eq.s32.totalorder %s18, 3
      %p64 = por %p62, %p63
      %p66 = scmp.ne.s32.totalorder %s49, %s65
      %p67 = scmp.eq.s32.totalorder %s18, 0
      %p68 = por %p66, %p67
      %s69 = ssub.s32 %s19, %s38
      %p70 = scmp.eq.s32.totalorder %s69, 0
      %s72 = sadd.s32 %s71, 1
      %s73 = scalar_select %p70, %s71, %s72
      %p76 = pneg %p70
      %p77 = scmp.eq.s32.totalorder %s12, 3
      %p78 = por %p76, %p77
      %p79 = scmp.ne.s32.totalorder %s71, %s74
      %p80 = scmp.eq.s32.totalorder %s12, 0
      %p81 = por %p79, %p80
      %p82 = scmp.ne.s32.totalorder %s71, %s74
      %p83 = scmp.eq.s32.totalorder %s17, 3
      %p84 = por %p82, %p83
      %p85 = scmp.ne.s32.totalorder %s74, %s75
      %p86 = scmp.eq.s32.totalorder %s17, 0
      %p87 = por %p85, %p86
      %p88 = scmp.ne.s32.totalorder %s74, %s75
      %p89 = scmp.eq.s32.totalorder %s18, 3
      %p90 = por %p88, %p89
      %p92 = scmp.ne.s32.totalorder %s75, %s91
      %p93 = scmp.eq.s32.totalorder %s18, 0
      %p94 = por %p92, %p93
      %s95 = ssub.s32 %s19, %s38
      %p96 = scmp.eq.s32.totalorder %s95, 0
      %s98 = sadd.s32 %s97, 1
      %s99 = scalar_select %p96, %s97, %s98
      %p102 = pneg %p96
      %p103 = scmp.eq.s32.totalorder %s12, 3
      %p104 = por %p102, %p103
      %p105 = scmp.ne.s32.totalorder %s97, %s100
      %p106 = scmp.eq.s32.totalorder %s12, 0
      %p107 = por %p105, %p106
      %p108 = scmp.ne.s32.totalorder %s97, %s100
      %p109 = scmp.eq.s32.totalorder %s17, 3
      %p110 = por %p108, %p109
      %p111 = scmp.ne.s32.totalorder %s100, %s101
      %p112 = scmp.eq.s32.totalorder %s17, 0
      %p113 = por %p111, %p112
      %p114 = scmp.ne.s32.totalorder %s100, %s101
      %p115 = scmp.eq.s32.totalorder %s18, 3
      %p116 = por %p114, %p115
      %p118 = scmp.ne.s32.totalorder %s101, %s117
      %p119 = scmp.eq.s32.totalorder %s18, 0
      %p120 = por %p118, %p119
      %s121 = ssub.s32 %s20, %s34
      %s122 = ssub.s32 %s19, %s38
      %s123 = sor.u32 %s121, %s122
      %s124 = ssub.s32 %s21, %s30
      %s125 = sor.u32 %s123, %s124
      %p126 = scmp.eq.s32.totalorder %s125, 0
      %s128 = sadd.s32 %s127, 1
      %s129 = scalar_select %p126, %s127, %s128
      %p132 = pneg %p126
      %p133 = scmp.eq.s32.totalorder %s12, 3
      %p134 = por %p132, %p133
      %p135 = scmp.ne.s32.totalorder %s127, %s130
      %p136 = scmp.eq.s32.totalorder %s12, 0
      %p137 = por %p135, %p136
      %p138 = scmp.ne.s32.totalorder %s127, %s130
      %p139 = scmp.eq.s32.totalorder %s17, 3
      %p140 = por %p138, %p139
      %p141 = scmp.ne.s32.totalorder %s130, %s131
      %p142 = scmp.eq.s32.totalorder %s17, 0
      %p143 = por %p141, %p142
      %p144 = scmp.ne.s32.totalorder %s130, %s131
      %p145 = scmp.eq.s32.totalorder %s18, 3
      %p146 = por %p144, %p145
      %p148 = scmp.ne.s32.totalorder %s131, %s147
      %p149 = scmp.eq.s32.totalorder %s18, 0
      %p150 = por %p148, %p149
      %p151 = scmp.le.s32.totalorder 1, %s12
      %p152 = scmp.lt.s32.totalorder %s12, 5
      %p153 = pnand %p151, %p152
      %p154 = pneg %p153
      // Predicated region
      $region9: #{tpu_custom_call.1} parent=5 // pred_check
        _
      $region10: #{tpu_custom_call.1} parent=5 // pred_check_branch
        %156 = sbr.rel (%p153) target = $region12
      $region11: #{tpu_custom_call.1} parent=5 // pred_region
        %s157 = ssub.s32 %s12, 1
      $region12: #{tpu_custom_call.1} parent=5 // pred_fallthru
        _
      %p158 = scmp.lt.s32.totalorder %s12, 4
      // Predicated region
      $region13: #{tpu_custom_call.1} parent=5 // pred_check
        %p159 = pneg %p158
      $region14: #{tpu_custom_call.1} parent=5 // pred_check_branch
        %161 = sbr.rel (%p159) target = $region16
      $region15: #{tpu_custom_call.1} parent=5 // pred_region
        // Predicated region
        $region17: #{tpu_custom_call.1} parent=15 // pred_check
          %p162 = pneg %p55
        $region18: #{tpu_custom_call.1} parent=15 // pred_check_branch
          %164 = sbr.rel (%p162) target = $region20
        $region19: #{tpu_custom_call.1} parent=15 // pred_region
          %p165 = scmp.lt.s32.totalorder %s20, 1
          %s166 = scalar_select %p165, %s20, 1
          %p167 = scmp.lt.s32.totalorder %s19, 1
          %s168 = scalar_select %p167, %s19, 1
          %p169 = scmp.lt.s32.totalorder %s21, 0
          %s170 = scalar_select %p169, %s21, 0
          %s171 = smul.addr %s168, 3
          %s172 = sadd.s32 %s170, %s171
          %s173 = smul.addr %s166, 6
          %s174 = sadd.s32 %s172, %s173
          %s175 = smul.addr %s174, 8
          %s176 = scalar_lea.vmem %s0, %s175
        $region20: #{tpu_custom_call.1} parent=15 // pred_fallthru
          _
        // Predicated region
        $region21: #{tpu_custom_call.1} parent=15 // pred_check
          %p177 = pneg %p81
        $region22: #{tpu_custom_call.1} parent=15 // pred_check_branch
          %179 = sbr.rel (%p177) target = $region24
        $region23: #{tpu_custom_call.1} parent=15 // pred_region
          %p180 = scmp.lt.s32.totalorder %s19, 1
          %s181 = scalar_select %p180, %s19, 1
          %s182 = smul.addr %s181, 8
          %s183 = scalar_lea.vmem %s1, %s182
        $region24: #{tpu_custom_call.1} parent=15 // pred_fallthru
          _
        // Predicated region
        $region25: #{tpu_custom_call.1} parent=15 // pred_check
          %p184 = pneg %p107
        $region26: #{tpu_custom_call.1} parent=15 // pred_check_branch
          %186 = sbr.rel (%p184) target = $region28
        $region27: #{tpu_custom_call.1} parent=15 // pred_region
          %p187 = scmp.lt.s32.totalorder %s19, 1
          %s188 = scalar_select %p187, %s19, 1
          %s189 = smul.addr %s188, 8
          %s190 = scalar_lea.vmem %s2, %s189
        $region28: #{tpu_custom_call.1} parent=15 // pred_fallthru
          _
      $region16: #{tpu_custom_call.1} parent=5 // pred_fallthru
        _
      %p191 = scmp.le.s32.totalorder 1, %s12
      %p192 = scmp.lt.s32.totalorder %s12, 5
      %p193 = pnand %p191, %p192
      %p194 = pneg %p193
      // Predicated region
      $region29: #{tpu_custom_call.1} parent=5 // pred_check
        _
      $region30: #{tpu_custom_call.1} parent=5 // pred_check_branch
        %196 = sbr.rel (%p193) target = $region32
      $region31: #{tpu_custom_call.1} parent=5 // pred_region
        %s197 = ssub.s32 %s12, 1
        %p198 = scmp.lt.s32.totalorder %s23, 1
        %s199 = scalar_select %p198, %s23, 1
        %p200 = scmp.lt.s32.totalorder %s22, 1
        %s201 = scalar_select %p200, %s22, 1
        %p202 = scmp.lt.s32.totalorder %s24, 0
        %s203 = scalar_select %p202, %s24, 0
        %s204 = smul.addr %s201, 3
        %s205 = sadd.s32 %s203, %s204
        %s206 = smul.addr %s199, 6
        %s207 = sadd.s32 %s205, %s206
        %s208 = smul.addr %s207, 8
        %s209 = scalar_lea.vmem %s0, %s208
        %p210 = pneg %p61
        %p211 = pneg %p58
        %p212 = scmp.lt.s32.totalorder %s22, 1
        %s213 = scalar_select %p212, %s22, 1
        %s214 = smul.addr %s213, 8
        %s215 = scalar_lea.vmem %s1, %s214
        %p216 = pneg %p87
        %p217 = pneg %p84
        %p218 = scmp.lt.s32.totalorder %s22, 1
        %s219 = scalar_select %p218, %s22, 1
        %s220 = smul.addr %s219, 8
        %s221 = scalar_lea.vmem %s2, %s220
        %p222 = pneg %p113
        %p223 = pneg %p110
        %p224 = pneg %p143
        %p225 = pneg %p140
        %s226 = sand.u32 %s130, 1
        %s227 = scalar_lea.sflag [#allocation3], %s226
        %s228 = sand.u32 %s130, 1
        %s229 = smul.addr %s228, 8
        %s230 = scalar_lea.vmem [#allocation2], %s229
        %p231 = scmp.lt.s32.totalorder %s23, 1
        %s232 = scalar_select %p231, %s23, 1
        %p233 = scmp.lt.s32.totalorder %s22, 1
        %s234 = scalar_select %p233, %s22, 1
        %p235 = scmp.lt.s32.totalorder %s24, 0
        %s236 = scalar_select %p235, %s24, 0
        %s237 = smul.addr %s234, 3
        %s238 = sadd.s32 %s236, %s237
        %s239 = smul.addr %s232, 6
        %s240 = sadd.s32 %s238, %s239
        %s241 = smul.addr %s240, 8
        %s242 = scalar_lea.vmem %s0, %s241
        %p243 = scmp.lt.s32.totalorder %s22, 1
        %s244 = scalar_select %p243, %s22, 1
        %s245 = smul.addr %s244, 8
        %s246 = scalar_lea.vmem %s1, %s245
        %p247 = scmp.lt.s32.totalorder %s22, 1
        %s248 = scalar_select %p247, %s22, 1
        %s249 = smul.addr %s248, 8
        %s250 = scalar_lea.vmem %s2, %s249
        %v251 = vld [vmem:[%s246] sm:$0xff]
        %v252 = vld [vmem:[%s242] sm:$0xff]
        %v253 = vld [vmem:[%s242 + $0x8] sm:$0xff]
        %v254 = vld [vmem:[%s242 + $0x10] sm:$0xff]
        %v255 = vld [vmem:[%s250] sm:$0xff]
        %257 = vset.pattern.permute.xlu0 0
        %258 = vperm.xlu0 %257, %v255
        %v259 = vpop.permute.xlu0 %258
        %vm261 = vcmask 195584
        %v263 = vsel %vm261, %v251, 0
        %265 = vmatprep.subr.mxu0 0.0
        %266 = vmatpush1.msra.mxu0 %v252
        %267 = vmatprep.subr.mxu0 0.0
        %268 = vmatpush1.msra.mxu0 %v253
        %269 = vmatprep.subr.mxu0 0.0
        %270 = vmatpush1.msra.mxu0 %v254
        %271 = vmatprep.subr.mxu0 0.0
        %272 = vmatpush1.msra.mxu0 0.0
        %273 = vmatprep.subr.mxu0 0.0
        %274 = vmatpush1.msra.mxu0 0.0
        %275 = vmatprep.subr.mxu0 0.0
        %276 = vmatpush1.msra.mxu0 0.0
        %277 = vmatprep.subr.mxu0 0.0
        %278 = vmatpush1.msra.mxu0 0.0
        %279 = vmatprep.subr.mxu0 0.0
        %280 = vmatpush1.msra.mxu0 0.0
        %281 = vmatprep.subr.mxu0 0.0
        %282 = vmatpush1.msra.mxu0 0.0
        %283 = vmatprep.subr.mxu0 0.0
        %284 = vmatpush1.msra.mxu0 0.0
        %285 = vmatprep.subr.mxu0 0.0
        %286 = vmatpush1.msra.mxu0 0.0
        %287 = vmatprep.subr.mxu0 0.0
        %288 = vmatpush1.msra.mxu0 0.0
        %289 = vmatprep.subr.mxu0 0.0
        %290 = vmatpush1.msra.mxu0 0.0
        %291 = vmatprep.subr.mxu0 0.0
        %292 = vmatpush1.msra.mxu0 0.0
        %293 = vmatprep.subr.mxu0 0.0
        %294 = vmatpush1.msra.mxu0 0.0
        %295 = vmatprep.subr.mxu0 0.0
        %296 = vmatpush1.msra.mxu0 0.0
        %297 = vmatprep.subr.mxu0 0.0
        %298 = vmatpush1.msra.mxu0 0.0
        %299 = vmatprep.subr.mxu0 0.0
        %300 = vmatpush1.msra.mxu0 0.0
        %301 = vmatprep.subr.mxu0 0.0
        %302 = vmatpush1.msra.mxu0 0.0
        %303 = vmatprep.subr.mxu0 0.0
        %304 = vmatpush1.msra.mxu0 0.0
        %305 = vmatprep.subr.mxu0 0.0
        %306 = vmatpush1.msra.mxu0 0.0
        %307 = vmatprep.subr.mxu0 0.0
        %308 = vmatpush1.msra.mxu0 0.0
        %309 = vmatprep.subr.mxu0 0.0
        %310 = vmatpush1.msra.mxu0 0.0
        %311 = vmatprep.subr.mxu0 0.0
        %312 = vmatpush1.msra.mxu0 0.0
        %313 = vmatprep.subr.mxu0 0.0
        %314 = vmatpush1.msra.mxu0 0.0
        %315 = vmatprep.subr.mxu0 0.0
        %316 = vmatpush1.msra.mxu0 0.0
        %317 = vmatprep.subr.mxu0 0.0
        %318 = vmatpush1.msra.mxu0 0.0
        %319 = vmatprep.subr.mxu0 0.0
        %320 = vmatpush1.msra.mxu0 0.0
        %321 = vmatprep.subr.mxu0 0.0
        %322 = vmatpush1.msra.mxu0 0.0
        %323 = vmatprep.subr.mxu0 0.0
        %324 = vmatpush1.msra.mxu0 0.0
        %325 = vmatprep.subr.mxu0 0.0
        %326 = vmatpush1.msra.mxu0 0.0
        %327 = vmatprep.subr.mxu0 0.0
        %328 = vmatpush1.msra.mxu0 0.0
        %329 = vmatprep.mubr.f32.mxu0 0.0
        %330 = vmatmul.mubr.f32.gmra.mrb[0].mxu0 %v263
        %v331 = vpop.f32.mrb[0].mxu0
        %v332 = vadd.f32 %v259, %v331
        %v333 = vpop.f32.mrb[0].mxu0
        %334 = vdwg.mxu0
        %vm335 = vcmask 130048
        %336 = vst.msk [vmem:[%s230] sm:$0xff] %vm335, %v332
        %s337 = sand.u32 %s130, 1
        %s338 = scalar_lea.sflag [#allocation3], %s337
        %s339 = sand.u32 %s130, 1
        %s340 = smul.addr %s339, 8
        %s341 = scalar_lea.vmem [#allocation2], %s340
        // Predicated region
        $region33: #{tpu_custom_call.1} parent=31 // pred_check
          %p342 = pneg %p140
        $region34: #{tpu_custom_call.1} parent=31 // pred_check_branch
          %344 = sbr.rel (%p342) target = $region36
        $region35: #{tpu_custom_call.1} parent=31 // pred_region
          %s346 = ssub.s32 128, 128
          %347 = vsyncadd %s338, %s346
          %s348 = sadd.s32 %s24, %s22
          %s349 = smul.addr %s23, 2
          %s350 = sadd.s32 %s348, %s349
          %s351 = smul.addr %s350, 128
          %s352 = scalar_lea.hbm %s3, %s351
          %s354 = sshll.u32 %s341, 4
          %s355 = int_to_ptr.vmem [resolvable:$true] %s354
          %357 = dma.vmem_to_hbm [thread:$0]  %s355, 128, %s352, %s338
        $region36: #{tpu_custom_call.1} parent=31 // pred_fallthru
          _
      $region32: #{tpu_custom_call.1} parent=5 // pred_fallthru
        _
      %p358 = scmp.le.s32.totalorder 2, %s12
      // Predicated region
      $region37: #{tpu_custom_call.1} parent=5 // pred_check
        %p359 = pneg %p358
      $region38: #{tpu_custom_call.1} parent=5 // pred_check_branch
        %361 = sbr.rel (%p359) target = $region40
      $region39: #{tpu_custom_call.1} parent=5 // pred_region
        %s362 = ssub.s32 %s12, 2
        // Predicated region
        $region41: #{tpu_custom_call.1} parent=39 // pred_check
          %p363 = pneg %p146
        $region42: #{tpu_custom_call.1} parent=39 // pred_check_branch
          %365 = sbr.rel (%p363) target = $region44
        $region43: #{tpu_custom_call.1} parent=39 // pred_region
          %s366 = sand.u32 %s131, 1
          %s367 = scalar_lea.sflag [#allocation3], %s366
          %s368 = sand.u32 %s131, 1
          %s369 = smul.addr %s368, 8
          %s370 = scalar_lea.vmem [#allocation2], %s369
          %371 = dma.done %s367, 128
        $region44: #{tpu_custom_call.1} parent=39 // pred_fallthru
          _
      $region40: #{tpu_custom_call.1} parent=5 // pred_fallthru
        _
    $region6: #{tpu_custom_call.1} parent=1 // loop_footer
      %s16 = sadd.s32 1, %s12
    $region7: #{tpu_custom_call.1} parent=1 // loop_footer_branch
      %11 = sbr.rel target = $region3
    $region8: #{tpu_custom_call.1} parent=1 // loop_exit
      _
    %372 = vsyncpa [#allocation3], 1
    %s373 = scalar_lea.sflag [#allocation3], 1
    %374 = vsyncpa %s373, 1

</llo_original>
